<compile_context>
chip_gen: v7x
topology: tpu7x:2x2x1
jax: 0.10.0
libtpu: 0.0.40
codegen_flags: <defaults>
</compile_context>

<pallas_src>
import jax
import jax.numpy as jnp
from jax.experimental import pallas as pl
from jax.experimental.pallas import tpu as pltpu

LANE = 128            # vreg lane width -> lane-dense output slab
SUBLANE = 8           # vreg sublane count
MAX_TILE_ROWS = 512   # 512*128*4B = 256 KiB per buffer; tiny vs any VMEM budget


def _affine_kernel(coef_ref, x_ref, o_ref):
    # coef_ref lives in SMEM: [w_eff, b_eff].  One VPU FMA per vreg.
    w = coef_ref[0]
    b = coef_ref[1]
    o_ref[...] = x_ref[...] * w + b


def _fold_affine_layers(params):
    """Fold Linear(1,64) -> 4x Linear(64,64) -> Linear(64,1) (no activations)
    into the scalar affine map y = x * w_eff + b_eff."""
    w_eff, b_eff = None, None
    for w, b in params:          # w: (in, out), b: (1, out)
        if w_eff is None:
            w_eff, b_eff = w, b
        else:
            w_eff = w_eff @ w
            b_eff = b_eff @ w + b
    # in = out = 1 for the composed map -> scalars
    return w_eff.reshape(()), b_eff.reshape(())


@jax.jit
def net_without_activation(x, params):
    """x: (B, 1) f32.  params: list of (W, b) with W in (in, out) layout.
    Matches the PyTorch forward pass of NetWithoutActivation."""
    batch = x.shape[0]

    # 1) Algebraic fold (done once, outside the kernel).
    w_eff, b_eff = _fold_affine_layers(params)
    coef = jnp.stack([w_eff, b_eff]).astype(jnp.float32)        # (2,) -> SMEM

    # 2) Lane-dense activation layout: (B,) padded and reshaped to (rows, 128)
    #    so stores are full-lane vst's, then gridded over row tiles.
    flat = x.reshape(-1).astype(jnp.float32)
    rows = max(1, pl.cdiv(batch, LANE))
    tile_rows = min(MAX_TILE_ROWS, rows)
    if tile_rows >= SUBLANE:
        tile_rows = (tile_rows // SUBLANE) * SUBLANE            # sublane-aligned
    n_tiles = pl.cdiv(rows, tile_rows)
    rows_padded = n_tiles * tile_rows
    padded = jnp.zeros((rows_padded * LANE,), jnp.float32).at[:batch].set(flat)
    x2d = padded.reshape(rows_padded, LANE)

    out2d = pl.pallas_call(
        _affine_kernel,
        out_shape=jax.ShapeDtypeStruct((rows_padded, LANE), jnp.float32),
        grid=(n_tiles,),
        in_specs=[
            pl.BlockSpec(memory_space=pltpu.MemorySpace.SMEM),  # coef scalars
            pl.BlockSpec((tile_rows, LANE), lambda i: (i, 0)),  # activation tile
        ],
        out_specs=pl.BlockSpec((tile_rows, LANE), lambda i: (i, 0)),
        compiler_params=pltpu.CompilerParams(
            dimension_semantics=("parallel",),  # lets v7x shard tiles over 2 TCs
        ),
    )(coef, x2d)

    return out2d.reshape(-1)[:batch].reshape(batch, 1)


def init_params(key):
    """Deterministic init matching nn.Sequential(Linear(1,64), 4x Linear(64,64),
    Linear(64,1)); W stored transposed vs PyTorch, i.e. (in, out)."""
    dims = [(1, 64), (64, 64), (64, 64), (64, 64), (64, 64), (64, 1)]
    params = []
    for i, (fan_in, fan_out) in enumerate(dims):
        kw, kb, key = jax.random.split(jax.random.fold_in(key, i), 3)
        bound = 1.0 / jnp.sqrt(fan_in)  # PyTorch default Linear init range
        w = jax.random.uniform(kw, (fan_in, fan_out), jnp.float32, -bound, bound)
        b = jax.random.uniform(kb, (1, fan_out), jnp.float32, -bound, bound)
        params.append((w, b))
    return params


if __name__ == "__main__":
    key = jax.random.PRNGKey(0)
    params = init_params(key)

    x = jax.random.normal(jax.random.fold_in(key, 999), (8, 1), dtype=jnp.float32)

    out = net_without_activation(x, params)
    out = jax.block_until_ready(out)

    # Pure-JAX reference: the original six chained affine layers.
    ref = x
    for w, b in params:
        ref = ref @ w + b

    assert out.shape == (8, 1)
    assert jnp.allclose(out, ref, atol=1e-4, rtol=1e-4), (out, ref)

    print("KERNEL_OK")
</pallas_src>

<mosaic_0001>
module attributes {stable_mosaic.version = 11 : i64} {
  func.func @_affine_kernel(%arg0: i32, %arg1: memref<2xf32, #tpu.memory_space<smem>>, %arg2: memref<1x128xf32, #tpu.memory_space<vmem>>, %arg3: memref<1x128xf32, #tpu.memory_space<vmem>>) attributes {dimension_semantics = [#tpu.dimension_semantics<parallel>], iteration_bounds = array<i64: 1>, scalar_prefetch = 0 : i64, scratch_operands = 0 : i64, tpu.core_type = #tpu.core_type<tc>, window_params = [{transform_indices = @transform_0, window_bounds = array<i64: 2>}, {transform_indices = @transform_1, window_bounds = array<i64: 1, 128>}, {transform_indices = @transform_2, window_bounds = array<i64: 1, 128>}]} {
    %c0 = arith.constant 0 : index
    %0 = memref.load %arg1[%c0] : memref<2xf32, #tpu.memory_space<smem>>
    %c1 = arith.constant 1 : index
    %1 = memref.load %arg1[%c1] : memref<2xf32, #tpu.memory_space<smem>>
    %c0_0 = arith.constant 0 : index
    %c0_1 = arith.constant 0 : index
    %2 = vector.load %arg2[%c0_0, %c0_1] : memref<1x128xf32, #tpu.memory_space<vmem>>, vector<1x128xf32>
    %3 = vector.broadcast %0 : f32 to vector<1x128xf32>
    %4 = arith.mulf %2, %3 : vector<1x128xf32>
    %5 = vector.broadcast %1 : f32 to vector<1x128xf32>
    %6 = arith.addf %4, %5 : vector<1x128xf32>
    %c0_2 = arith.constant 0 : index
    %c0_3 = arith.constant 0 : index
    %7 = vector.load %arg3[%c0_2, %c0_3] : memref<1x128xf32, #tpu.memory_space<vmem>>, vector<1x128xf32>
    tpu.vector_store %arg3[%c0_2, %c0_3], %6 {strides = array<i32>} : memref<1x128xf32, #tpu.memory_space<vmem>>, vector<1x128xf32>,
    return
  }
  func.func @transform_0(%arg0: i32) -> i32 {
    %c0_i32 = arith.constant 0 : i32
    %c0_i32_0 = arith.constant 0 : i32
    return %c0_i32 : i32
  }
  func.func @transform_1(%arg0: i32) -> (i32, i32) {
    %c0_i32 = arith.constant 0 : i32
    %c0_i32_0 = arith.constant 0 : i32
    return %arg0, %c0_i32 : i32, i32
  }
  func.func @transform_2(%arg0: i32) -> (i32, i32) {
    %c0_i32 = arith.constant 0 : i32
    %c0_i32_0 = arith.constant 0 : i32
    return %arg0, %c0_i32 : i32, i32
  }
}

</mosaic_0001>

<llo_original>
// kernel: net_without_activation.1
$region0: #{net_without_activation.1}
  #allocation0 [shape = 'u32[]', space=smem, size = 0x4, offset = 0x4, fixed_abs, tag = 'smem constant byte address 0x4 - core index']
  #allocation1 [shape = 'u32[144,128]{1,0:T(1,128)}', space=vmem, size = 0x12000, scoped, tag = 'internal scratch']
  %s0 = inlined_call_operand.vmem [shape: f32[2], index: 0, kind: input, shape index: {}]
  %s1 = inlined_call_operand.vmem [shape: f32[1,128], index: 1, kind: input, shape index: {}]
  %s2 = inlined_call_operand.vmem [shape: f32[1,128], index: 2, kind: output, shape index: {}]
  %s3 = sld [smem:[#allocation0]]
  $region22: #{net_without_activation.1} parent=0
    _
  %s5 = ssub.s32 1, %s3
  %s6 = scalar_select 0, %s5, %s3
  $region1: #{net_without_activation.1} parent=0
    #allocation2 [shape = 'u8[512]{0}', space=smem, size = 0x200, scoped, tag = 'input window, operand 0, single buffered']
    #allocation3 [shape = 's32[1]{0}', space=sflag, size = 0x4, scoped, tag = 'scoped memory for net_without_activation.1']
    %7 = vsyncpa [#allocation3], 0
    // Predicated region
    $region2: #{net_without_activation.1} parent=1 // pred_check
      _
    $region3: #{net_without_activation.1} parent=1 // pred_check_branch
      %9 = sbr.rel (0) target = $region5
    $region4: #{net_without_activation.1} parent=1 // pred_region
      %s11 = ssub.s32 16, 16
      %12 = vsyncadd [#allocation3], %s11
      %s14 = sshll.u32 %s0, 4
      %s15 = int_to_ptr.vmem [resolvable:$true] %s14
      %17 = dma.vmem_to_smem %s15, 16, [#allocation2], [#allocation3]
    $region5: #{net_without_activation.1} parent=1 // pred_fallthru
      _
    // Predicated region
    $region6: #{net_without_activation.1} parent=1 // pred_check
      _
    $region7: #{net_without_activation.1} parent=1 // pred_check_branch
      %19 = sbr.rel (0) target = $region9
    $region8: #{net_without_activation.1} parent=1 // pred_region
      _
    $region9: #{net_without_activation.1} parent=1 // pred_fallthru
      _
    // Predicated region
    $region10: #{net_without_activation.1} parent=1 // pred_check
      _
    $region11: #{net_without_activation.1} parent=1 // pred_check_branch
      %21 = sbr.rel (0) target = $region13
    $region12: #{net_without_activation.1} parent=1 // pred_region
      %22 = dma.done [#allocation3], 16
    $region13: #{net_without_activation.1} parent=1 // pred_fallthru
      _
    %23 = sfence
    %s24 = sld [smem:[#allocation2]]
    %s25 = sld [smem:[#allocation2 + $0x1]]
    %v26 = vld [vmem:[%s1] sm:$0x1]
    %v27 = vstv %s24
    %v28 = vmul.f32 %v26, %v27
    %v29 = vstv %s25
    %v30 = vadd.f32 %v28, %v29
    %31 = vst [vmem:[%s2] sm:$0x1] %v30
    // Predicated region
    $region14: #{net_without_activation.1} parent=1 // pred_check
      _
    $region15: #{net_without_activation.1} parent=1 // pred_check_branch
      %33 = sbr.rel (0) target = $region17
    $region16: #{net_without_activation.1} parent=1 // pred_region
      _
    $region17: #{net_without_activation.1} parent=1 // pred_fallthru
      _
    // Predicated region
    $region18: #{net_without_activation.1} parent=1 // pred_check
      _
    $region19: #{net_without_activation.1} parent=1 // pred_check_branch
      %35 = sbr.rel (0) target = $region21
    $region20: #{net_without_activation.1} parent=1 // pred_region
      _
    $region21: #{net_without_activation.1} parent=1 // pred_fallthru
      _
    %36 = vsyncpa [#allocation3], 1

</llo_original>
